<compile_context>
chip_gen: v7x
topology: tpu7x:2x2x1
jax: 0.10.0
libtpu: 0.0.40
codegen_flags: <defaults>
</compile_context>

<pallas_src>
import functools

import jax
import jax.numpy as jnp
from jax.experimental import pallas as pl
from jax.experimental.pallas import tpu as pltpu

SMOOTH = 1.0
# ~1 MiB of f32 per input block: large enough for ~85%+ of HBM roofline,
# small enough to be VMEM-safe on v5e/v6e/v7x with double buffering.
_TARGET_BLOCK_ELEMS = 256 * 1024


def _dice_partial_kernel(x_ref, y_ref, inter_ref, sxy_ref, *,
                         rows, block_rows, needs_mask):
    x = x_ref[...].astype(jnp.float32)
    y = y_ref[...].astype(jnp.float32)

    if needs_mask:
        # Last block may extend past the real data; zero out the invalid rows.
        row = pl.program_id(0) * block_rows + jax.lax.broadcasted_iota(
            jnp.int32, x.shape, 0)
        valid = row < rows
        zero = jnp.float32(0.0)
        x = jnp.where(valid, x, zero)
        y = jnp.where(valid, y, zero)

    # Lane-preserving partial sums (sublane reduction only); lane-dense stores.
    inter_ref[...] = jnp.sum(x * y, axis=0, keepdims=True)[None]
    sxy_ref[...] = jnp.sum(x + y, axis=0, keepdims=True)[None]


def _pick_lane(n):
    """Widest lane count (multiple of 128) dividing n; else pad up to 128."""
    for lane in (1024, 512, 256, 128):
        if n % lane == 0:
            return lane, 0
    return 128, (-n) % 128


def dice_loss(inputs, target):
    """Sorensen-Dice loss forward pass (matches the PyTorch reference)."""
    xf = inputs.reshape(-1)
    yf = target.reshape(-1)
    n = xf.shape[0]

    lane, pad = _pick_lane(n)
    if pad:
        # Rare fallback (n not a multiple of 128). Zero padding is
        # sum-neutral for all reductions below.
        xf = jnp.pad(xf, (0, pad))
        yf = jnp.pad(yf, (0, pad))
    rows = (n + pad) // lane

    max_rows = max(8, (_TARGET_BLOCK_ELEMS // lane) // 8 * 8)
    block_rows = min(max_rows, rows)          # == rows (full dim) for small inputs
    num_blocks = pl.cdiv(rows, block_rows)
    needs_mask = (rows % block_rows) != 0     # only the last block can be partial

    x2 = xf.reshape(rows, lane)
    y2 = yf.reshape(rows, lane)

    kernel = functools.partial(
        _dice_partial_kernel,
        rows=rows, block_rows=block_rows, needs_mask=needs_mask)

    inter_p, sxy_p = pl.pallas_call(
        kernel,
        out_shape=(
            jax.ShapeDtypeStruct((num_blocks, 1, lane), jnp.float32),
            jax.ShapeDtypeStruct((num_blocks, 1, lane), jnp.float32),
        ),
        grid_spec=pltpu.PrefetchScalarGridSpec(
            num_scalar_prefetch=0,
            grid=(num_blocks,),
            in_specs=[
                pl.BlockSpec((block_rows, lane), lambda i: (i, 0)),
                pl.BlockSpec((block_rows, lane), lambda i: (i, 0)),
            ],
            out_specs=[
                pl.BlockSpec((1, 1, lane), lambda i: (i, 0, 0)),
                pl.BlockSpec((1, 1, lane), lambda i: (i, 0, 0)),
            ],
        ),
        compiler_params=pltpu.CompilerParams(
            # Independent per-block partial sums -> both TensorCores on v7x.
            dimension_semantics=("parallel",),
            vmem_limit_bytes=32 * 1024 * 1024,
        ),
    )(x2, y2)

    # Tiny final combine (num_blocks * lane elements) in the wrapper.
    intersection = jnp.sum(inter_p)
    sum_xy = jnp.sum(sxy_p)
    dice = (2.0 * intersection + SMOOTH) / (sum_xy + SMOOTH)
    return 1.0 - dice


def dice_loss_ref(inputs, target):
    x = inputs.reshape(-1).astype(jnp.float32)
    y = target.reshape(-1).astype(jnp.float32)
    intersection = jnp.sum(x * y)
    dice = (2.0 * intersection + SMOOTH) / (jnp.sum(x) + jnp.sum(y) + SMOOTH)
    return 1.0 - dice


if __name__ == "__main__":
    key = jax.random.PRNGKey(0)
    k1, k2 = jax.random.split(key)
    # Typical segmentation shapes: predicted probabilities & binary target mask.
    x = jax.nn.sigmoid(jax.random.normal(k1, (2, 4, 16, 16), dtype=jnp.float32))
    t = (jax.random.uniform(k2, (2, 4, 16, 16)) > 0.5).astype(jnp.float32)

    loss = jax.block_until_ready(jax.jit(dice_loss)(x, t))
    ref = jax.block_until_ready(dice_loss_ref(x, t))

    assert jnp.allclose(loss, ref, atol=1e-5, rtol=1e-4), (loss, ref)
    print("KERNEL_OK")
</pallas_src>

<mosaic_0001>
module attributes {stable_mosaic.version = 11 : i64} {
  func.func @_dice_partial_kernel(%arg0: i32, %arg1: memref<2x1024xf32, #tpu.memory_space<vmem>>, %arg2: memref<2x1024xf32, #tpu.memory_space<vmem>>, %arg3: memref<1x1x1024xf32, #tpu.memory_space<vmem>>, %arg4: memref<1x1x1024xf32, #tpu.memory_space<vmem>>) attributes {dimension_semantics = [#tpu.dimension_semantics<parallel>], iteration_bounds = array<i64: 1>, scalar_prefetch = 0 : i64, scratch_operands = 0 : i64, tpu.core_type = #tpu.core_type<tc>, window_params = [{transform_indices = @transform_0, window_bounds = array<i64: 2, 1024>}, {transform_indices = @transform_1, window_bounds = array<i64: 2, 1024>}, {transform_indices = @transform_2, window_bounds = array<i64: 1, 1, 1024>}, {transform_indices = @transform_3, window_bounds = array<i64: 1, 1, 1024>}]} {
    %c0 = arith.constant 0 : index
    %c0_0 = arith.constant 0 : index
    %0 = vector.load %arg1[%c0, %c0_0] : memref<2x1024xf32, #tpu.memory_space<vmem>>, vector<2x1024xf32>
    %c0_1 = arith.constant 0 : index
    %c0_2 = arith.constant 0 : index
    %1 = vector.load %arg2[%c0_1, %c0_2] : memref<2x1024xf32, #tpu.memory_space<vmem>>, vector<2x1024xf32>
    %2 = arith.mulf %0, %1 : vector<2x1024xf32>
    %cst = arith.constant dense<0.000000e+00> : vector<1024xf32>
    %3 = vector.multi_reduction <add>, %2, %cst [0] : vector<2x1024xf32> to vector<1024xf32>
    %4 = vector.shape_cast %3 : vector<1024xf32> to vector<1x1024xf32>
    %5 = vector.shape_cast %4 : vector<1x1024xf32> to vector<1x1x1024xf32>
    %c0_3 = arith.constant 0 : index
    %c0_4 = arith.constant 0 : index
    %c0_5 = arith.constant 0 : index
    %6 = vector.load %arg3[%c0_3, %c0_4, %c0_5] : memref<1x1x1024xf32, #tpu.memory_space<vmem>>, vector<1x1x1024xf32>
    tpu.vector_store %arg3[%c0_3, %c0_4, %c0_5], %5 {strides = array<i32>} : memref<1x1x1024xf32, #tpu.memory_space<vmem>>, vector<1x1x1024xf32>,
    %7 = arith.addf %0, %1 : vector<2x1024xf32>
    %cst_6 = arith.constant dense<0.000000e+00> : vector<1024xf32>
    %8 = vector.multi_reduction <add>, %7, %cst_6 [0] : vector<2x1024xf32> to vector<1024xf32>
    %9 = vector.shape_cast %8 : vector<1024xf32> to vector<1x1024xf32>
    %10 = vector.shape_cast %9 : vector<1x1024xf32> to vector<1x1x1024xf32>
    %c0_7 = arith.constant 0 : index
    %c0_8 = arith.constant 0 : index
    %c0_9 = arith.constant 0 : index
    %11 = vector.load %arg4[%c0_7, %c0_8, %c0_9] : memref<1x1x1024xf32, #tpu.memory_space<vmem>>, vector<1x1x1024xf32>
    tpu.vector_store %arg4[%c0_7, %c0_8, %c0_9], %10 {strides = array<i32>} : memref<1x1x1024xf32, #tpu.memory_space<vmem>>, vector<1x1x1024xf32>,
    return
  }
  func.func @transform_0(%arg0: i32) -> (i32, i32) {
    %c0_i32 = arith.constant 0 : i32
    %c0_i32_0 = arith.constant 0 : i32
    return %arg0, %c0_i32 : i32, i32
  }
  func.func @transform_1(%arg0: i32) -> (i32, i32) {
    %c0_i32 = arith.constant 0 : i32
    %c0_i32_0 = arith.constant 0 : i32
    return %arg0, %c0_i32 : i32, i32
  }
  func.func @transform_2(%arg0: i32) -> (i32, i32, i32) {
    %c0_i32 = arith.constant 0 : i32
    %c0_i32_0 = arith.constant 0 : i32
    %c0_i32_1 = arith.constant 0 : i32
    return %arg0, %c0_i32, %c0_i32_0 : i32, i32, i32
  }
  func.func @transform_3(%arg0: i32) -> (i32, i32, i32) {
    %c0_i32 = arith.constant 0 : i32
    %c0_i32_0 = arith.constant 0 : i32
    %c0_i32_1 = arith.constant 0 : i32
    return %arg0, %c0_i32, %c0_i32_0 : i32, i32, i32
  }
}

</mosaic_0001>

<llo_original>
// kernel: dice_loss.1
$region0: #{dice_loss.1}
  #allocation0 [shape = 'u32[]', space=smem, size = 0x4, offset = 0x4, fixed_abs, tag = 'smem constant byte address 0x4 - core index']
  #allocation1 [shape = 'u32[144,128]{1,0:T(1,128)}', space=vmem, size = 0x12000, scoped, tag = 'internal scratch']
  %s0 = inlined_call_operand.vmem [shape: f32[2,1024], index: 0, kind: input, shape index: {}]
  %s1 = inlined_call_operand.vmem [shape: f32[2,1024], index: 1, kind: input, shape index: {}]
  %s2 = inlined_call_operand.vmem [shape: f32[1,1,1024], index: 2, kind: output, shape index: {0}]
  %s3 = inlined_call_operand.vmem [shape: f32[1,1,1024], index: 3, kind: output, shape index: {1}]
  %4 = xla_tuple %s2, %s3
  %s5 = sld [smem:[#allocation0]]
  $region26: #{dice_loss.1} parent=0
    _
  %s7 = ssub.s32 1, %s5
  %s8 = scalar_select 0, %s7, %s5
  // Predicated region
  $region2: #{dice_loss.1} parent=0 // pred_check
    _
  $region3: #{dice_loss.1} parent=0 // pred_check_branch
    %10 = sbr.rel (0) target = $region5
  $region4: #{dice_loss.1} parent=0 // pred_region
    _
  $region5: #{dice_loss.1} parent=0 // pred_fallthru
    _
  // Predicated region
  $region6: #{dice_loss.1} parent=0 // pred_check
    _
  $region7: #{dice_loss.1} parent=0 // pred_check_branch
    %12 = sbr.rel (0) target = $region9
  $region8: #{dice_loss.1} parent=0 // pred_region
    _
  $region9: #{dice_loss.1} parent=0 // pred_fallthru
    _
  %v13 = vld [vmem:[%s0] sm:$0xff]
  %v14 = vld [vmem:[%s0 + $0x8] sm:$0xff]
  %v15 = vld [vmem:[%s1] sm:$0xff]
  %v16 = vld [vmem:[%s1 + $0x8] sm:$0xff]
  %v17 = vmul.f32 %v13, %v15
  %v18 = vmul.f32 %v14, %v16
  %v21 = vcombine.high %v17, %v17
  %v23 = vunpack.c.l.s4 1983009808
  %v24 = vunpack.c.0.s8 %v23
  %v25 = vlaneseq
  %v26 = vshrl.u32 %v25, 7
  %v27 = vsub.s32 %v24, %v26
  %v28 = vrot.slane %v17, %v27
  %v30 = vunpack.c.l.s4 1983009808
  %v31 = vunpack.c.0.s8 %v30
  %v32 = vlaneseq
  %v33 = vshrl.u32 %v32, 7
  %v34 = vsub.s32 %v31, %v33
  %v35 = vrot.slane %v21, %v34
  %v36 = vcombine.high %v28, %v28
  %v37 = vcombine.high %v35, %v35
  %v38 = vcombine.high %v18, %v18
  %v40 = vunpack.c.l.s4 1983009808
  %v41 = vunpack.c.0.s8 %v40
  %v42 = vlaneseq
  %v43 = vshrl.u32 %v42, 7
  %v44 = vsub.s32 %v41, %v43
  %v45 = vrot.slane %v18, %v44
  %v47 = vunpack.c.l.s4 1983009808
  %v48 = vunpack.c.0.s8 %v47
  %v49 = vlaneseq
  %v50 = vshrl.u32 %v49, 7
  %v51 = vsub.s32 %v48, %v50
  %v52 = vrot.slane %v38, %v51
  %v53 = vcombine.high %v45, %v45
  %v54 = vcombine.high %v52, %v52
  %vm63 = vcmask 1041408
  %v64 = vsel %vm63, %v28, 0.0
  %v65 = vrot.slane %v64, 4
  %v66 = vadd.f32 %v64, %v65
  %v67 = vrot.slane %v66, 2
  %v68 = vadd.f32 %v66, %v67
  %v69 = vrot.slane %v68, 1
  %v70 = vadd.f32 %v68, %v69
  %v71 = vsel %vm63, %v36, 0.0
  %v72 = vrot.slane %v71, 4
  %v73 = vadd.f32 %v71, %v72
  %v74 = vrot.slane %v73, 2
  %v75 = vadd.f32 %v73, %v74
  %v76 = vrot.slane %v75, 1
  %v77 = vadd.f32 %v75, %v76
  %v78 = vsel %vm63, %v35, 0.0
  %v79 = vrot.slane %v78, 4
  %v80 = vadd.f32 %v78, %v79
  %v81 = vrot.slane %v80, 2
  %v82 = vadd.f32 %v80, %v81
  %v83 = vrot.slane %v82, 1
  %v84 = vadd.f32 %v82, %v83
  %v85 = vsel %vm63, %v37, 0.0
  %v86 = vrot.slane %v85, 4
  %v87 = vadd.f32 %v85, %v86
  %v88 = vrot.slane %v87, 2
  %v89 = vadd.f32 %v87, %v88
  %v90 = vrot.slane %v89, 1
  %v91 = vadd.f32 %v89, %v90
  %v92 = vsel %vm63, %v45, 0.0
  %v93 = vrot.slane %v92, 4
  %v94 = vadd.f32 %v92, %v93
  %v95 = vrot.slane %v94, 2
  %v96 = vadd.f32 %v94, %v95
  %v97 = vrot.slane %v96, 1
  %v98 = vadd.f32 %v96, %v97
  %v99 = vsel %vm63, %v53, 0.0
  %v100 = vrot.slane %v99, 4
  %v101 = vadd.f32 %v99, %v100
  %v102 = vrot.slane %v101, 2
  %v103 = vadd.f32 %v101, %v102
  %v104 = vrot.slane %v103, 1
  %v105 = vadd.f32 %v103, %v104
  %v106 = vsel %vm63, %v52, 0.0
  %v107 = vrot.slane %v106, 4
  %v108 = vadd.f32 %v106, %v107
  %v109 = vrot.slane %v108, 2
  %v110 = vadd.f32 %v108, %v109
  %v111 = vrot.slane %v110, 1
  %v112 = vadd.f32 %v110, %v111
  %v113 = vsel %vm63, %v54, 0.0
  %v114 = vrot.slane %v113, 4
  %v115 = vadd.f32 %v113, %v114
  %v116 = vrot.slane %v115, 2
  %v117 = vadd.f32 %v115, %v116
  %v118 = vrot.slane %v117, 1
  %v119 = vadd.f32 %v117, %v118
  %v128 = vcombine.low %v70, %v77
  %v129 = vcombine.low %v84, %v91
  %v130 = vcombine.low %v98, %v105
  %v131 = vcombine.low %v112, %v119
  %v133 = vunpack.c.l.s4 1966171168
  %v134 = vunpack.c.0.s8 %v133
  %v135 = vlaneseq
  %v136 = vshrl.u32 %v135, 7
  %v137 = vsub.s32 %v134, %v136
  %v138 = vrot.slane %v128, %v137
  %v140 = vunpack.c.l.s4 1966171168
  %v141 = vunpack.c.0.s8 %v140
  %v142 = vlaneseq
  %v143 = vshrl.u32 %v142, 7
  %v144 = vsub.s32 %v141, %v143
  %v145 = vrot.slane %v129, %v144
  %v147 = vunpack.c.l.s4 1966171168
  %v148 = vunpack.c.0.s8 %v147
  %v149 = vlaneseq
  %v150 = vshrl.u32 %v149, 7
  %v151 = vsub.s32 %v148, %v150
  %v152 = vrot.slane %v130, %v151
  %v154 = vunpack.c.l.s4 1966171168
  %v155 = vunpack.c.0.s8 %v154
  %v156 = vlaneseq
  %v157 = vshrl.u32 %v156, 7
  %v158 = vsub.s32 %v155, %v157
  %v159 = vrot.slane %v131, %v158
  %v160 = vcombine.low %v138, %v145
  %v161 = vcombine.low %v152, %v159
  %v163 = vunpack.c.l.s4 1966171168
  %v164 = vunpack.c.0.s8 %v163
  %v165 = vlaneseq
  %v166 = vshrl.u32 %v165, 7
  %v167 = vsub.s32 %v164, %v166
  %v168 = vrot.slane %v160, %v167
  %v170 = vunpack.c.l.s4 1966171168
  %v171 = vunpack.c.0.s8 %v170
  %v172 = vlaneseq
  %v173 = vshrl.u32 %v172, 7
  %v174 = vsub.s32 %v171, %v173
  %v175 = vrot.slane %v161, %v174
  %v176 = vcombine.low %v168, %v175
  %178 = vst [vmem:[%s2] sm:$0xff] %v176
  %v179 = vadd.f32 %v13, %v15
  %v180 = vadd.f32 %v14, %v16
  %v183 = vcombine.high %v179, %v179
  %v185 = vunpack.c.l.s4 1983009808
  %v186 = vunpack.c.0.s8 %v185
  %v187 = vlaneseq
  %v188 = vshrl.u32 %v187, 7
  %v189 = vsub.s32 %v186, %v188
  %v190 = vrot.slane %v179, %v189
  %v192 = vunpack.c.l.s4 1983009808
  %v193 = vunpack.c.0.s8 %v192
  %v194 = vlaneseq
  %v195 = vshrl.u32 %v194, 7
  %v196 = vsub.s32 %v193, %v195
  %v197 = vrot.slane %v183, %v196
  %v198 = vcombine.high %v190, %v190
  %v199 = vcombine.high %v197, %v197
  %v200 = vcombine.high %v180, %v180
  %v202 = vunpack.c.l.s4 1983009808
  %v203 = vunpack.c.0.s8 %v202
  %v204 = vlaneseq
  %v205 = vshrl.u32 %v204, 7
  %v206 = vsub.s32 %v203, %v205
  %v207 = vrot.slane %v180, %v206
  %v209 = vunpack.c.l.s4 1983009808
  %v210 = vunpack.c.0.s8 %v209
  %v211 = vlaneseq
  %v212 = vshrl.u32 %v211, 7
  %v213 = vsub.s32 %v210, %v212
  %v214 = vrot.slane %v200, %v213
  %v215 = vcombine.high %v207, %v207
  %v216 = vcombine.high %v214, %v214
  %v225 = vsel %vm63, %v190, 0.0
  %v226 = vrot.slane %v225, 4
  %v227 = vadd.f32 %v225, %v226
  %v228 = vrot.slane %v227, 2
  %v229 = vadd.f32 %v227, %v228
  %v230 = vrot.slane %v229, 1
  %v231 = vadd.f32 %v229, %v230
  %v232 = vsel %vm63, %v198, 0.0
  %v233 = vrot.slane %v232, 4
  %v234 = vadd.f32 %v232, %v233
  %v235 = vrot.slane %v234, 2
  %v236 = vadd.f32 %v234, %v235
  %v237 = vrot.slane %v236, 1
  %v238 = vadd.f32 %v236, %v237
  %v239 = vsel %vm63, %v197, 0.0
  %v240 = vrot.slane %v239, 4
  %v241 = vadd.f32 %v239, %v240
  %v242 = vrot.slane %v241, 2
  %v243 = vadd.f32 %v241, %v242
  %v244 = vrot.slane %v243, 1
  %v245 = vadd.f32 %v243, %v244
  %v246 = vsel %vm63, %v199, 0.0
  %v247 = vrot.slane %v246, 4
  %v248 = vadd.f32 %v246, %v247
  %v249 = vrot.slane %v248, 2
  %v250 = vadd.f32 %v248, %v249
  %v251 = vrot.slane %v250, 1
  %v252 = vadd.f32 %v250, %v251
  %v253 = vsel %vm63, %v207, 0.0
  %v254 = vrot.slane %v253, 4
  %v255 = vadd.f32 %v253, %v254
  %v256 = vrot.slane %v255, 2
  %v257 = vadd.f32 %v255, %v256
  %v258 = vrot.slane %v257, 1
  %v259 = vadd.f32 %v257, %v258
  %v260 = vsel %vm63, %v215, 0.0
  %v261 = vrot.slane %v260, 4
  %v262 = vadd.f32 %v260, %v261
  %v263 = vrot.slane %v262, 2
  %v264 = vadd.f32 %v262, %v263
  %v265 = vrot.slane %v264, 1
  %v266 = vadd.f32 %v264, %v265
  %v267 = vsel %vm63, %v214, 0.0
  %v268 = vrot.slane %v267, 4
  %v269 = vadd.f32 %v267, %v268
  %v270 = vrot.slane %v269, 2
  %v271 = vadd.f32 %v269, %v270
  %v272 = vrot.slane %v271, 1
  %v273 = vadd.f32 %v271, %v272
  %v274 = vsel %vm63, %v216, 0.0
  %v275 = vrot.slane %v274, 4
  %v276 = vadd.f32 %v274, %v275
  %v277 = vrot.slane %v276, 2
  %v278 = vadd.f32 %v276, %v277
  %v279 = vrot.slane %v278, 1
  %v280 = vadd.f32 %v278, %v279
  %v289 = vcombine.low %v231, %v238
  %v290 = vcombine.low %v245, %v252
  %v291 = vcombine.low %v259, %v266
  %v292 = vcombine.low %v273, %v280
  %v294 = vunpack.c.l.s4 1966171168
  %v295 = vunpack.c.0.s8 %v294
  %v296 = vlaneseq
  %v297 = vshrl.u32 %v296, 7
  %v298 = vsub.s32 %v295, %v297
  %v299 = vrot.slane %v289, %v298
  %v301 = vunpack.c.l.s4 1966171168
  %v302 = vunpack.c.0.s8 %v301
  %v303 = vlaneseq
  %v304 = vshrl.u32 %v303, 7
  %v305 = vsub.s32 %v302, %v304
  %v306 = vrot.slane %v290, %v305
  %v308 = vunpack.c.l.s4 1966171168
  %v309 = vunpack.c.0.s8 %v308
  %v310 = vlaneseq
  %v311 = vshrl.u32 %v310, 7
  %v312 = vsub.s32 %v309, %v311
  %v313 = vrot.slane %v291, %v312
  %v315 = vunpack.c.l.s4 1966171168
  %v316 = vunpack.c.0.s8 %v315
  %v317 = vlaneseq
  %v318 = vshrl.u32 %v317, 7
  %v319 = vsub.s32 %v316, %v318
  %v320 = vrot.slane %v292, %v319
  %v321 = vcombine.low %v299, %v306
  %v322 = vcombine.low %v313, %v320
  %v324 = vunpack.c.l.s4 1966171168
  %v325 = vunpack.c.0.s8 %v324
  %v326 = vlaneseq
  %v327 = vshrl.u32 %v326, 7
  %v328 = vsub.s32 %v325, %v327
  %v329 = vrot.slane %v321, %v328
  %v331 = vunpack.c.l.s4 1966171168
  %v332 = vunpack.c.0.s8 %v331
  %v333 = vlaneseq
  %v334 = vshrl.u32 %v333, 7
  %v335 = vsub.s32 %v332, %v334
  %v336 = vrot.slane %v322, %v335
  %v337 = vcombine.low %v329, %v336
  %339 = vst [vmem:[%s3] sm:$0xff] %v337
  // Predicated region
  $region10: #{dice_loss.1} parent=0 // pred_check
    _
  $region11: #{dice_loss.1} parent=0 // pred_check_branch
    %341 = sbr.rel (0) target = $region13
  $region12: #{dice_loss.1} parent=0 // pred_region
    _
  $region13: #{dice_loss.1} parent=0 // pred_fallthru
    _
  // Predicated region
  $region14: #{dice_loss.1} parent=0 // pred_check
    _
  $region15: #{dice_loss.1} parent=0 // pred_check_branch
    %343 = sbr.rel (0) target = $region17
  $region16: #{dice_loss.1} parent=0 // pred_region
    _
  $region17: #{dice_loss.1} parent=0 // pred_fallthru
    _
  // Predicated region
  $region18: #{dice_loss.1} parent=0 // pred_check
    _
  $region19: #{dice_loss.1} parent=0 // pred_check_branch
    %345 = sbr.rel (0) target = $region21
  $region20: #{dice_loss.1} parent=0 // pred_region
    _
  $region21: #{dice_loss.1} parent=0 // pred_fallthru
    _
  // Predicated region
  $region22: #{dice_loss.1} parent=0 // pred_check
    _
  $region23: #{dice_loss.1} parent=0 // pred_check_branch
    %347 = sbr.rel (0) target = $region25
  $region24: #{dice_loss.1} parent=0 // pred_region
    _
  $region25: #{dice_loss.1} parent=0 // pred_fallthru
    _

</llo_original>
